<compile_context>
chip_gen: v7x
topology: tpu7x:2x2x1
jax: 0.10.0
libtpu: 0.0.40
codegen_flags: <defaults>
</compile_context>

<pallas_src>
import functools

import jax
import jax.numpy as jnp
from jax.experimental import pallas as pl
from jax.experimental.pallas import tpu as pltpu


HIDDEN = 64
LANE = 128                     # TPU lane width.
CONST_LANE = HIDDEN            # hidden lane pinned to 1.0 (carries b2/b3/bh).

# Row offsets inside the packed bf16 parameter buffer (all static, 16-aligned).
_W1_ROW = 0                    # rows 0..state_dim-1            : W1
_W2_ROW = 128                  # rows 128..191 W2, row 128+64 = b2
_W3_ROW = 256                  # rows 256..319 W3, row 256+64 = b3
_WH_ROW = 384                  # rows 384..447 [Wp|Wv], row 384+64 = [bp|bv]
_B1_ROW = 512                  # single row: b1 (+ 1.0 marker at CONST_LANE)
_PACK_ROWS = 528               # 4*128 weight rows + one 16-row bf16 tile


def _round_up(n, m):
    return ((n + m - 1) // m) * m


def _fused_mlp(x, w1, w2, w3, wh, b1):
    """Shared math for the Pallas kernel and the small-batch XLA bypass.

    x: f32[tile, state_dim]; w*: bf16 weight slabs; b1: f32[1, 128]
    (b1 also pins hidden lane CONST_LANE to 1.0 so b2/b3/bh ride inside
    w2/w3/wh). Returns f32[tile, 128] fused [policy | value] output.
    """
    h = jnp.dot(x.astype(jnp.bfloat16), w1, preferred_element_type=jnp.float32) + b1
    h = jnp.maximum(h, 0.0).astype(jnp.bfloat16)
    h = jnp.maximum(
        jnp.dot(h, w2, preferred_element_type=jnp.float32), 0.0
    ).astype(jnp.bfloat16)
    h = jnp.maximum(
        jnp.dot(h, w3, preferred_element_type=jnp.float32), 0.0
    ).astype(jnp.bfloat16)
    return jnp.dot(h, wh, preferred_element_type=jnp.float32)


def _actor_critic_kernel(x_ref, p_ref, out_ref, *, state_dim):
    """x_ref: f32[tile, state_dim], p_ref: bf16[528, 128], out_ref: f32[tile, 128]."""
    # Static slices of the single packed parameter block (VMEM-resident views).
    w1 = p_ref[_W1_ROW:_W1_ROW + state_dim, :]
    w2 = p_ref[_W2_ROW:_W2_ROW + LANE, :]
    w3 = p_ref[_W3_ROW:_W3_ROW + LANE, :]
    wh = p_ref[_WH_ROW:_WH_ROW + LANE, :]
    b1 = p_ref[_B1_ROW:_B1_ROW + 1, :].astype(jnp.float32)
    out_ref[...] = _fused_mlp(x_ref[...], w1, w2, w3, wh, b1).astype(out_ref.dtype)


def _forward_xla_packed(x, packed, state_dim):
    """Plain-XLA bypass for tiny batches (launch-overhead-bound regime)."""
    w1 = packed[_W1_ROW:_W1_ROW + state_dim, :]
    w2 = packed[_W2_ROW:_W2_ROW + LANE, :]
    w3 = packed[_W3_ROW:_W3_ROW + LANE, :]
    wh = packed[_WH_ROW:_WH_ROW + LANE, :]
    b1 = packed[_B1_ROW:_B1_ROW + 1, :].astype(jnp.float32)
    return _fused_mlp(x, w1, w2, w3, wh, b1)


@functools.partial(
    jax.jit, static_argnames=("action_dim", "min_pallas_batch", "batch_tile")
)
def actor_critic_forward(x, packed_params, action_dim,
                         min_pallas_batch=64, batch_tile=512):
    """Forward pass. Returns (pi_logits [B, action_dim], value [B, 1])."""
    b, state_dim = x.shape
    assert state_dim <= LANE and action_dim + 1 <= LANE
    x = x.astype(jnp.float32)

    if b < min_pallas_batch:
        # Tiny-batch RL-inference regime: fixed pallas_call overhead dominates
        # four ~B x 128 x 128 matmuls; let fused XLA handle it.
        fused = _forward_xla_packed(x, packed_params, state_dim)
    else:
        # Batch tiling: big tiles amortize per-grid-step overhead; at least two
        # "parallel" steps whenever B is non-trivial so both v7x TensorCores
        # get work (no-op on single-TC v5e/v6e).
        b8 = _round_up(b, 8)
        steps = max(2, pl.cdiv(b8, batch_tile)) if b8 >= 16 else 1
        tile = _round_up(pl.cdiv(b8, steps), 8)
        b_pad = steps * tile
        x_in = x if b_pad == b else jnp.pad(x, ((0, b_pad - b), (0, 0)))

        cost = pl.CostEstimate(
            flops=2 * b_pad * (state_dim * LANE + 3 * LANE * LANE),
            transcendentals=0,
            bytes_accessed=(x_in.size * 4 + packed_params.size * 2
                            + b_pad * LANE * 4),
        )

        fused = pl.pallas_call(
            functools.partial(_actor_critic_kernel, state_dim=state_dim),
            out_shape=jax.ShapeDtypeStruct((b_pad, LANE), jnp.float32),
            grid=(steps,),
            in_specs=[
                # x stays (B, state_dim): last block dim == full array dim.
                pl.BlockSpec((tile, state_dim), lambda i: (i, 0)),
                # Constant index_map -> packed weights VMEM-resident across steps.
                pl.BlockSpec((_PACK_ROWS, LANE), lambda i: (0, 0)),
            ],
            out_specs=pl.BlockSpec((tile, LANE), lambda i: (i, 0)),
            compiler_params=pltpu.CompilerParams(
                dimension_semantics=("parallel",),
            ),
            cost_estimate=cost,
        )(x_in, packed_params)

    pi_logits = fused[:b, :action_dim]
    value = fused[:b, action_dim:action_dim + 1]
    return pi_logits, value


def init_params(key, state_dim, action_dim):
    """PyTorch nn.Linear-style init (U[-1/sqrt(fan_in), +1/sqrt(fan_in)]).
    Weights stored as (in, out) so y = x @ W + b."""
    def linear(k, fan_in, fan_out):
        kw, kb = jax.random.split(k)
        bound = 1.0 / jnp.sqrt(jnp.float32(fan_in))
        w = jax.random.uniform(kw, (fan_in, fan_out), jnp.float32, -bound, bound)
        bvec = jax.random.uniform(kb, (1, fan_out), jnp.float32, -bound, bound)
        return w, bvec

    k1, k2, k3, kp, kv = jax.random.split(key, 5)
    w1, b1 = linear(k1, state_dim, HIDDEN)
    w2, b2 = linear(k2, HIDDEN, HIDDEN)
    w3, b3 = linear(k3, HIDDEN, HIDDEN)
    wp, bp = linear(kp, HIDDEN, action_dim)
    wv, bv = linear(kv, HIDDEN, 1)
    return dict(w1=w1, b1=b1, w2=w2, b2=b2, w3=w3, b3=b3,
                wp=wp, bp=bp, wv=wv, bv=bv)


def pack_params(p, state_dim, action_dim):
    """Pack all weights + biases into one lane-dense bf16[528, 128] buffer.

    Layout (per-layer 128-row slabs; hidden lane CONST_LANE=64 is the
    constant-1 lane carrying b2/b3/b_head):
      rows   0..: W1 (state_dim x 64)
      rows 128..: W2 (64x64), row 128+64 = [b2 | 1@lane64]
      rows 256..: W3 (64x64), row 256+64 = [b3 | 1@lane64]
      rows 384..: [Wp | Wv]  (64 x (A+1)), row 384+64 = [bp | bv]
      row  512  : [b1 | 1@lane64]
    Zero padding is exact: padded lanes stay 0 (or exactly 1 on the const
    lane) through ReLU and contribute nothing downstream.
    """
    assert state_dim <= LANE, "state_dim must fit one 128-lane weight slab"
    assert HIDDEN + 1 <= LANE, "hidden width + constant lane must fit 128 lanes"
    assert action_dim + 1 <= LANE, "fused [policy|value] head must fit 128 lanes"

    buf = jnp.zeros((_PACK_ROWS, LANE), jnp.float32)
    # Layer 1.
    buf = buf.at[_W1_ROW:_W1_ROW + state_dim, 0:HIDDEN].set(p["w1"])
    buf = buf.at[_B1_ROW, 0:HIDDEN].set(p["b1"][0])
    buf = buf.at[_B1_ROW, CONST_LANE].set(1.0)          # pin const-1 hidden lane
    # Layer 2 (bias folded into row CONST_LANE).
    buf = buf.at[_W2_ROW:_W2_ROW + HIDDEN, 0:HIDDEN].set(p["w2"])
    buf = buf.at[_W2_ROW + CONST_LANE, 0:HIDDEN].set(p["b2"][0])
    buf = buf.at[_W2_ROW + CONST_LANE, CONST_LANE].set(1.0)
    # Layer 3.
    buf = buf.at[_W3_ROW:_W3_ROW + HIDDEN, 0:HIDDEN].set(p["w3"])
    buf = buf.at[_W3_ROW + CONST_LANE, 0:HIDDEN].set(p["b3"][0])
    buf = buf.at[_W3_ROW + CONST_LANE, CONST_LANE].set(1.0)
    # Fused head: [policy | value] side by side on the lane axis.
    buf = buf.at[_WH_ROW:_WH_ROW + HIDDEN, 0:action_dim].set(p["wp"])
    buf = buf.at[_WH_ROW:_WH_ROW + HIDDEN, action_dim].set(p["wv"][:, 0])
    buf = buf.at[_WH_ROW + CONST_LANE, 0:action_dim].set(p["bp"][0])
    buf = buf.at[_WH_ROW + CONST_LANE, action_dim].set(p["bv"][0, 0])
    return buf.astype(jnp.bfloat16)


def reference_forward(x, p):
    """Pure-JAX f32 reference mirroring the PyTorch module."""
    h = jnp.maximum(x @ p["w1"] + p["b1"], 0.0)
    h = jnp.maximum(h @ p["w2"] + p["b2"], 0.0)
    h = jnp.maximum(h @ p["w3"] + p["b3"], 0.0)
    return h @ p["wp"] + p["bp"], h @ p["wv"] + p["bv"]


if __name__ == "__main__":
    state_dim, action_dim = 16, 8

    key = jax.random.PRNGKey(0)
    kx1, kx2, kparams = jax.random.split(key, 3)

    params = init_params(kparams, state_dim, action_dim)
    packed = pack_params(params, state_dim, action_dim)

    x_small = jax.random.normal(kx1, (8, state_dim), dtype=jnp.float32)
    x_big = jax.random.normal(kx2, (96, state_dim), dtype=jnp.float32)

    # 1) Small batch forced through the Pallas kernel (single grid step).
    pi_s, v_s = actor_critic_forward(x_small, packed, action_dim, min_pallas_batch=0)
    jax.block_until_ready((pi_s, v_s))
    # 2) Larger batch -> 2-step "parallel" grid (shards across both v7x TCs).
    pi_b, v_b = actor_critic_forward(x_big, packed, action_dim)
    jax.block_until_ready((pi_b, v_b))
    # 3) Tiny-batch auto path -> plain-XLA bypass (launch-overhead regime).
    pi_a, v_a = actor_critic_forward(x_small, packed, action_dim)
    jax.block_until_ready((pi_a, v_a))

    # Correctness vs. f32 reference; bf16 MXU operands -> loosened tolerance.
    TOL = 5e-2
    for pi, v, x in ((pi_s, v_s, x_small), (pi_b, v_b, x_big), (pi_a, v_a, x_small)):
        pi_ref, v_ref = reference_forward(x, params)
        assert pi.shape == (x.shape[0], action_dim)
        assert v.shape == (x.shape[0], 1)
        assert jnp.allclose(pi, pi_ref, atol=TOL, rtol=TOL)
        assert jnp.allclose(v, v_ref, atol=TOL, rtol=TOL)

    print("KERNEL_OK")
</pallas_src>

<mosaic_0001>
module attributes {stable_mosaic.version = 11 : i64} {
  func.func @_actor_critic_kernel(%arg0: i32, %arg1: memref<8x16xf32, #tpu.memory_space<vmem>>, %arg2: memref<528x128xbf16, #tpu.memory_space<vmem>>, %arg3: memref<8x128xf32, #tpu.memory_space<vmem>>) attributes {dimension_semantics = [#tpu.dimension_semantics<parallel>], iteration_bounds = array<i64: 1>, scalar_prefetch = 0 : i64, scratch_operands = 0 : i64, tpu.core_type = #tpu.core_type<tc>, window_params = [{transform_indices = @transform_0, window_bounds = array<i64: 8, 16>}, {pipeline_mode = #tpu.pipeline_mode<synchronous>, transform_indices = @transform_1, window_bounds = array<i64: 528, 128>}, {transform_indices = @transform_2, window_bounds = array<i64: 8, 128>}]} {
    %c0 = arith.constant 0 : index
    %c0_0 = arith.constant 0 : index
    %0 = vector.load %arg2[%c0, %c0_0] : memref<528x128xbf16, #tpu.memory_space<vmem>>, vector<16x128xbf16>
    %c128 = arith.constant 128 : index
    %c0_1 = arith.constant 0 : index
    %1 = vector.load %arg2[%c128, %c0_1] : memref<528x128xbf16, #tpu.memory_space<vmem>>, vector<128x128xbf16>
    %c256 = arith.constant 256 : index
    %c0_2 = arith.constant 0 : index
    %2 = vector.load %arg2[%c256, %c0_2] : memref<528x128xbf16, #tpu.memory_space<vmem>>, vector<128x128xbf16>
    %c384 = arith.constant 384 : index
    %c0_3 = arith.constant 0 : index
    %3 = vector.load %arg2[%c384, %c0_3] : memref<528x128xbf16, #tpu.memory_space<vmem>>, vector<128x128xbf16>
    %c512 = arith.constant 512 : index
    %c0_4 = arith.constant 0 : index
    %4 = vector.load %arg2[%c512, %c0_4] : memref<528x128xbf16, #tpu.memory_space<vmem>>, vector<1x128xbf16>
    %5 = arith.extf %4 : vector<1x128xbf16> to vector<1x128xf32>
    %c0_5 = arith.constant 0 : index
    %c0_6 = arith.constant 0 : index
    %6 = vector.load %arg1[%c0_5, %c0_6] : memref<8x16xf32, #tpu.memory_space<vmem>>, vector<8x16xf32>
    %7 = arith.truncf %6 : vector<8x16xf32> to vector<8x16xbf16>
    %cst = arith.constant dense<0.000000e+00> : vector<8x128xf32>
    %8 = tpu.matmul %7, %0, %cst {dimension_numbers = #tpu.dot_dimension_numbers<[1], [0], [0], [1], [0, 0, 1, 1], [], []>} : vector<8x16xbf16>, vector<16x128xbf16>, vector<8x128xf32> -> vector<8x128xf32>
    %9 = vector.broadcast %5 : vector<1x128xf32> to vector<8x128xf32>
    %10 = arith.addf %8, %9 : vector<8x128xf32>
    %cst_7 = arith.constant 0.000000e+00 : f32
    %11 = vector.broadcast %cst_7 : f32 to vector<8x128xf32>
    %12 = arith.maximumf %10, %11 : vector<8x128xf32>
    %13 = arith.truncf %12 : vector<8x128xf32> to vector<8x128xbf16>
    %cst_8 = arith.constant dense<0.000000e+00> : vector<8x128xf32>
    %14 = tpu.matmul %13, %1, %cst_8 {dimension_numbers = #tpu.dot_dimension_numbers<[1], [0], [0], [1], [0, 0, 1, 1], [], []>} : vector<8x128xbf16>, vector<128x128xbf16>, vector<8x128xf32> -> vector<8x128xf32>
    %cst_9 = arith.constant 0.000000e+00 : f32
    %15 = vector.broadcast %cst_9 : f32 to vector<8x128xf32>
    %16 = arith.maximumf %14, %15 : vector<8x128xf32>
    %17 = arith.truncf %16 : vector<8x128xf32> to vector<8x128xbf16>
    %cst_10 = arith.constant dense<0.000000e+00> : vector<8x128xf32>
    %18 = tpu.matmul %17, %2, %cst_10 {dimension_numbers = #tpu.dot_dimension_numbers<[1], [0], [0], [1], [0, 0, 1, 1], [], []>} : vector<8x128xbf16>, vector<128x128xbf16>, vector<8x128xf32> -> vector<8x128xf32>
    %cst_11 = arith.constant 0.000000e+00 : f32
    %19 = vector.broadcast %cst_11 : f32 to vector<8x128xf32>
    %20 = arith.maximumf %18, %19 : vector<8x128xf32>
    %21 = arith.truncf %20 : vector<8x128xf32> to vector<8x128xbf16>
    %cst_12 = arith.constant dense<0.000000e+00> : vector<8x128xf32>
    %22 = tpu.matmul %21, %3, %cst_12 {dimension_numbers = #tpu.dot_dimension_numbers<[1], [0], [0], [1], [0, 0, 1, 1], [], []>} : vector<8x128xbf16>, vector<128x128xbf16>, vector<8x128xf32> -> vector<8x128xf32>
    %c0_13 = arith.constant 0 : index
    %c0_14 = arith.constant 0 : index
    %23 = vector.load %arg3[%c0_13, %c0_14] : memref<8x128xf32, #tpu.memory_space<vmem>>, vector<8x128xf32>
    tpu.vector_store %arg3[%c0_13, %c0_14], %22 {strides = array<i32>} : memref<8x128xf32, #tpu.memory_space<vmem>>, vector<8x128xf32>,
    return
  }
  func.func @transform_0(%arg0: i32) -> (i32, i32) {
    %c0_i32 = arith.constant 0 : i32
    %c0_i32_0 = arith.constant 0 : i32
    return %arg0, %c0_i32 : i32, i32
  }
  func.func @transform_1(%arg0: i32) -> (i32, i32) {
    %c0_i32 = arith.constant 0 : i32
    %c0_i32_0 = arith.constant 0 : i32
    %c0_i32_1 = arith.constant 0 : i32
    return %c0_i32, %c0_i32_0 : i32, i32
  }
  func.func @transform_2(%arg0: i32) -> (i32, i32) {
    %c0_i32 = arith.constant 0 : i32
    %c0_i32_0 = arith.constant 0 : i32
    return %arg0, %c0_i32 : i32, i32
  }
}

</mosaic_0001>

<llo_original>
// kernel: actor_critic_forward.1
$region0: #{actor_critic_forward.1}
  #allocation0 [shape = 'u32[]', space=smem, size = 0x4, offset = 0x4, fixed_abs, tag = 'smem constant byte address 0x4 - core index']
  #allocation1 [shape = 'u32[144,128]{1,0:T(1,128)}', space=vmem, size = 0x12000, scoped, tag = 'internal scratch']
  %s0 = inlined_call_operand.hbm [shape: f32[8,16], index: 0, kind: input, shape index: {}]
  %s1 = inlined_call_operand.hbm [shape: bf16[528,128], index: 1, kind: input, shape index: {}]
  %s2 = inlined_call_operand.vmem [shape: f32[8,128], index: 2, kind: output, shape index: {}]
  %s3 = sld [smem:[#allocation0]]
  $region26: #{actor_critic_forward.1} parent=0
    _
  %s5 = ssub.s32 1, %s3
  %s6 = scalar_select 0, %s5, %s3
  $region1: #{actor_critic_forward.1} parent=0
    #allocation2 [shape = 'u8[4096]{0}', space=vmem, size = 0x1000, scoped, tag = 'input window, operand 0, single buffered']
    #allocation3 [shape = 's32[1]{0}', space=sflag, size = 0x4, scoped, tag = 'scoped memory for actor_critic_forward.1']
    #allocation4 [shape = 'u8[135168]{0}', space=vmem, size = 0x21000, scoped, tag = 'input window, operand 1, single buffered']
    #allocation5 [shape = 's32[1]{0}', space=sflag, size = 0x4, scoped, tag = 'scoped memory for actor_critic_forward.1']
    %7 = vsyncpa [#allocation3], 0
    %8 = vsyncpa [#allocation5], 0
    // Predicated region
    $region2: #{actor_critic_forward.1} parent=1 // pred_check
      _
    $region3: #{actor_critic_forward.1} parent=1 // pred_check_branch
      %10 = sbr.rel (0) target = $region5
    $region4: #{actor_critic_forward.1} parent=1 // pred_region
      %s12 = ssub.s32 128, 128
      %13 = vsyncadd [#allocation3], %s12
      %s15 = sshll.u32 [#allocation2], 4
      %s16 = int_to_ptr.vmem [resolvable:$true] %s15
      %18 = dma.hbm_to_vmem [thread:$0]  %s0, 128, %s16, [#allocation3]
    $region5: #{actor_critic_forward.1} parent=1 // pred_fallthru
      _
    // Predicated region
    $region6: #{actor_critic_forward.1} parent=1 // pred_check
      _
    $region7: #{actor_critic_forward.1} parent=1 // pred_check_branch
      %20 = sbr.rel (0) target = $region9
    $region8: #{actor_critic_forward.1} parent=1 // pred_region
      %s22 = ssub.s32 4224, 4224
      %23 = vsyncadd [#allocation5], %s22
      %s24 = sshll.u32 [#allocation4], 4
      %s25 = int_to_ptr.vmem [resolvable:$true] %s24
      %30 = dma.hbm_to_vmem [thread:$0]  %s1, 4224, %s25, [#allocation5], 64, 64, 4
    $region9: #{actor_critic_forward.1} parent=1 // pred_fallthru
      _
    // Predicated region
    $region10: #{actor_critic_forward.1} parent=1 // pred_check
      _
    $region11: #{actor_critic_forward.1} parent=1 // pred_check_branch
      %32 = sbr.rel (0) target = $region13
    $region12: #{actor_critic_forward.1} parent=1 // pred_region
      %33 = dma.done [#allocation3], 128
    $region13: #{actor_critic_forward.1} parent=1 // pred_fallthru
      _
    // Predicated region
    $region14: #{actor_critic_forward.1} parent=1 // pred_check
      _
    $region15: #{actor_critic_forward.1} parent=1 // pred_check_branch
      %35 = sbr.rel (0) target = $region17
    $region16: #{actor_critic_forward.1} parent=1 // pred_region
      %36 = dma.done [#allocation5], 4224
    $region17: #{actor_critic_forward.1} parent=1 // pred_fallthru
      _
    %v38 = vld [vmem:[#allocation4] sm:$0xf]
    %v39 = vld [vmem:[#allocation4 + $0x4] sm:$0xf]
    %v40 = vld [vmem:[#allocation4 + $0x40] sm:$0xf]
    %v41 = vld [vmem:[#allocation4 + $0x44] sm:$0xf]
    %v42 = vld [vmem:[#allocation4 + $0x48] sm:$0xf]
    %v43 = vld [vmem:[#allocation4 + $0x4c] sm:$0xf]
    %v44 = vld [vmem:[#allocation4 + $0x50] sm:$0xf]
    %v45 = vld [vmem:[#allocation4 + $0x54] sm:$0xf]
    %v46 = vld [vmem:[#allocation4 + $0x58] sm:$0xf]
    %v47 = vld [vmem:[#allocation4 + $0x5c] sm:$0xf]
    %v48 = vld [vmem:[#allocation4 + $0x60] sm:$0xf]
    %v49 = vld [vmem:[#allocation4 + $0x64] sm:$0xf]
    %v50 = vld [vmem:[#allocation4 + $0x68] sm:$0xf]
    %v51 = vld [vmem:[#allocation4 + $0x6c] sm:$0xf]
    %v52 = vld [vmem:[#allocation4 + $0x70] sm:$0xf]
    %v53 = vld [vmem:[#allocation4 + $0x74] sm:$0xf]
    %v54 = vld [vmem:[#allocation4 + $0x78] sm:$0xf]
    %v55 = vld [vmem:[#allocation4 + $0x7c] sm:$0xf]
    %v56 = vld [vmem:[#allocation4 + $0x80] sm:$0xf]
    %v57 = vld [vmem:[#allocation4 + $0x84] sm:$0xf]
    %v58 = vld [vmem:[#allocation4 + $0x88] sm:$0xf]
    %v59 = vld [vmem:[#allocation4 + $0x8c] sm:$0xf]
    %v60 = vld [vmem:[#allocation4 + $0x90] sm:$0xf]
    %v61 = vld [vmem:[#allocation4 + $0x94] sm:$0xf]
    %v62 = vld [vmem:[#allocation4 + $0x98] sm:$0xf]
    %v63 = vld [vmem:[#allocation4 + $0x9c] sm:$0xf]
    %v64 = vld [vmem:[#allocation4 + $0xa0] sm:$0xf]
    %v65 = vld [vmem:[#allocation4 + $0xa4] sm:$0xf]
    %v66 = vld [vmem:[#allocation4 + $0xa8] sm:$0xf]
    %v67 = vld [vmem:[#allocation4 + $0xac] sm:$0xf]
    %v68 = vld [vmem:[#allocation4 + $0xb0] sm:$0xf]
    %v69 = vld [vmem:[#allocation4 + $0xb4] sm:$0xf]
    %v70 = vld [vmem:[#allocation4 + $0xb8] sm:$0xf]
    %v71 = vld [vmem:[#allocation4 + $0xbc] sm:$0xf]
    %v72 = vld [vmem:[#allocation4 + $0xc0] sm:$0xf]
    %v73 = vld [vmem:[#allocation4 + $0xc4] sm:$0xf]
    %v74 = vld [vmem:[#allocation4 + $0xc8] sm:$0xf]
    %v75 = vld [vmem:[#allocation4 + $0xcc] sm:$0xf]
    %v76 = vld [vmem:[#allocation4 + $0xd0] sm:$0xf]
    %v77 = vld [vmem:[#allocation4 + $0xd4] sm:$0xf]
    %v78 = vld [vmem:[#allocation4 + $0xd8] sm:$0xf]
    %v79 = vld [vmem:[#allocation4 + $0xdc] sm:$0xf]
    %v80 = vld [vmem:[#allocation4 + $0xe0] sm:$0xf]
    %v81 = vld [vmem:[#allocation4 + $0xe4] sm:$0xf]
    %v82 = vld [vmem:[#allocation4 + $0xe8] sm:$0xf]
    %v83 = vld [vmem:[#allocation4 + $0xec] sm:$0xf]
    %v84 = vld [vmem:[#allocation4 + $0xf0] sm:$0xf]
    %v85 = vld [vmem:[#allocation4 + $0xf4] sm:$0xf]
    %v86 = vld [vmem:[#allocation4 + $0xf8] sm:$0xf]
    %v87 = vld [vmem:[#allocation4 + $0xfc] sm:$0xf]
    %v88 = vld [vmem:[#allocation4 + $0x100] sm:$0x1]
    %v89 = vunpack.c.l.bf16 %v88
    %v90 = vld [vmem:[#allocation2] sm:$0xff]
    %v91 = vpack.c.bf16 %v90, %v90
    %v92 = vlaneseq
    %v93 = vshrl.u32 %v92, 7
    %v94 = vsub.s32 0, %v93
    %v95 = vrot.slane %v89, %v94
    %v98 = vunpack.c.l.b16 %v38
    %v99 = vunpack.c.l.b16 %v39
    %v100 = vpack.c.b16 %v99, %v98
    %vm102 = vcmask 130048
    %v104 = vsel %vm102, %v91, 0
    %106 = vmatprep.subr.bf16.mxu0 0
    %107 = vmatpush1.bf16.msra.mxu0 %v100
    %108 = vmatprep.subr.bf16.mxu0 0
    %109 = vmatpush1.bf16.msra.mxu0 0
    %110 = vmatprep.subr.bf16.mxu0 0
    %111 = vmatpush1.bf16.msra.mxu0 0
    %112 = vmatprep.subr.bf16.mxu0 0
    %113 = vmatpush1.bf16.msra.mxu0 0
    %114 = vmatprep.subr.bf16.mxu0 0
    %115 = vmatpush1.bf16.msra.mxu0 0
    %116 = vmatprep.subr.bf16.mxu0 0
    %117 = vmatpush1.bf16.msra.mxu0 0
    %118 = vmatprep.subr.bf16.mxu0 0
    %119 = vmatpush1.bf16.msra.mxu0 0
    %120 = vmatprep.subr.bf16.mxu0 0
    %121 = vmatpush1.bf16.msra.mxu0 0
    %122 = vmatprep.subr.bf16.mxu0 0
    %123 = vmatpush1.bf16.msra.mxu0 0
    %124 = vmatprep.subr.bf16.mxu0 0
    %125 = vmatpush1.bf16.msra.mxu0 0
    %126 = vmatprep.subr.bf16.mxu0 0
    %127 = vmatpush1.bf16.msra.mxu0 0
    %128 = vmatprep.subr.bf16.mxu0 0
    %129 = vmatpush1.bf16.msra.mxu0 0
    %130 = vmatprep.subr.bf16.mxu0 0
    %131 = vmatpush1.bf16.msra.mxu0 0
    %132 = vmatprep.subr.bf16.mxu0 0
    %133 = vmatpush1.bf16.msra.mxu0 0
    %134 = vmatprep.subr.bf16.mxu0 0
    %135 = vmatpush1.bf16.msra.mxu0 0
    %136 = vmatprep.subr.bf16.mxu0 0
    %137 = vmatpush1.bf16.msra.mxu0 0
    %138 = vmatprep.mubr.bf16.mxu0 0
    %139 = vmatmul.mubr.bf16.gmra.mrb[0].mxu0 %v104
    %v140 = vpop.f32.mrb[0].mxu0
    %v141 = vadd.f32 %v95, %v140
    %v142 = vpop.f32.mrb[0].mxu0
    %v143 = vpop.f32.mrb[0].mxu0
    %v144 = vpop.f32.mrb[0].mxu0
    %145 = vdwg.mxu0
    %v146 = vmax.f32 %v141, 0.0
    %v147 = vpack.c.bf16 %v146, %v146
    %v164 = vunpack.c.l.b16 %v40
    %v165 = vunpack.c.l.b16 %v41
    %v166 = vunpack.c.l.b16 %v42
    %v167 = vunpack.c.l.b16 %v43
    %v168 = vunpack.c.l.b16 %v44
    %v169 = vunpack.c.l.b16 %v45
    %v170 = vunpack.c.l.b16 %v46
    %v171 = vunpack.c.l.b16 %v47
    %v172 = vunpack.c.l.b16 %v48
    %v173 = vunpack.c.l.b16 %v49
    %v174 = vunpack.c.l.b16 %v50
    %v175 = vunpack.c.l.b16 %v51
    %v176 = vunpack.c.l.b16 %v52
    %v177 = vunpack.c.l.b16 %v53
    %v178 = vunpack.c.l.b16 %v54
    %v179 = vunpack.c.l.b16 %v55
    %v180 = vpack.c.b16 %v165, %v164
    %v181 = vpack.c.b16 %v167, %v166
    %v182 = vpack.c.b16 %v169, %v168
    %v183 = vpack.c.b16 %v171, %v170
    %v184 = vpack.c.b16 %v173, %v172
    %v185 = vpack.c.b16 %v175, %v174
    %v186 = vpack.c.b16 %v177, %v176
    %v187 = vpack.c.b16 %v179, %v178
    %196 = vmatprep.subr.bf16.mxu0 0
    %197 = vmatpush1.bf16.msra.mxu0 %v180
    %198 = vmatprep.subr.bf16.mxu0 0
    %199 = vmatpush1.bf16.msra.mxu0 %v181
    %200 = vmatprep.subr.bf16.mxu0 0
    %201 = vmatpush1.bf16.msra.mxu0 %v182
    %202 = vmatprep.subr.bf16.mxu0 0
    %203 = vmatpush1.bf16.msra.mxu0 %v183
    %204 = vmatprep.subr.bf16.mxu0 0
    %205 = vmatpush1.bf16.msra.mxu0 %v184
    %206 = vmatprep.subr.bf16.mxu0 0
    %207 = vmatpush1.bf16.msra.mxu0 %v185
    %208 = vmatprep.subr.bf16.mxu0 0
    %209 = vmatpush1.bf16.msra.mxu0 %v186
    %210 = vmatprep.subr.bf16.mxu0 0
    %211 = vmatpush1.bf16.msra.mxu0 %v187
    %212 = vmatprep.subr.bf16.mxu0 0
    %213 = vmatpush1.bf16.msra.mxu0 0
    %214 = vmatprep.subr.bf16.mxu0 0
    %215 = vmatpush1.bf16.msra.mxu0 0
    %216 = vmatprep.subr.bf16.mxu0 0
    %217 = vmatpush1.bf16.msra.mxu0 0
    %218 = vmatprep.subr.bf16.mxu0 0
    %219 = vmatpush1.bf16.msra.mxu0 0
    %220 = vmatprep.subr.bf16.mxu0 0
    %221 = vmatpush1.bf16.msra.mxu0 0
    %222 = vmatprep.subr.bf16.mxu0 0
    %223 = vmatpush1.bf16.msra.mxu0 0
    %224 = vmatprep.subr.bf16.mxu0 0
    %225 = vmatpush1.bf16.msra.mxu0 0
    %226 = vmatprep.subr.bf16.mxu0 0
    %227 = vmatpush1.bf16.msra.mxu0 0
    %228 = vmatprep.mubr.bf16.mxu0 0
    %229 = vmatmul.mubr.bf16.gmra.mrb[0].mxu0 %v147
    %v230 = vpop.f32.mrb[0].mxu0
    %v231 = vadd.f32 0.0, %v230
    %v232 = vpop.f32.mrb[0].mxu0
    %v233 = vpop.f32.mrb[0].mxu0
    %v234 = vpop.f32.mrb[0].mxu0
    %235 = vdwg.mxu0
    %v236 = vmax.f32 %v231, 0.0
    %v237 = vpack.c.bf16 %v236, %v236
    %v254 = vunpack.c.l.b16 %v56
    %v255 = vunpack.c.l.b16 %v57
    %v256 = vunpack.c.l.b16 %v58
    %v257 = vunpack.c.l.b16 %v59
    %v258 = vunpack.c.l.b16 %v60
    %v259 = vunpack.c.l.b16 %v61
    %v260 = vunpack.c.l.b16 %v62
    %v261 = vunpack.c.l.b16 %v63
    %v262 = vunpack.c.l.b16 %v64
    %v263 = vunpack.c.l.b16 %v65
    %v264 = vunpack.c.l.b16 %v66
    %v265 = vunpack.c.l.b16 %v67
    %v266 = vunpack.c.l.b16 %v68
    %v267 = vunpack.c.l.b16 %v69
    %v268 = vunpack.c.l.b16 %v70
    %v269 = vunpack.c.l.b16 %v71
    %v270 = vpack.c.b16 %v255, %v254
    %v271 = vpack.c.b16 %v257, %v256
    %v272 = vpack.c.b16 %v259, %v258
    %v273 = vpack.c.b16 %v261, %v260
    %v274 = vpack.c.b16 %v263, %v262
    %v275 = vpack.c.b16 %v265, %v264
    %v276 = vpack.c.b16 %v267, %v266
    %v277 = vpack.c.b16 %v269, %v268
    %286 = vmatprep.subr.bf16.mxu0 0
    %287 = vmatpush1.bf16.msra.mxu0 %v270
    %288 = vmatprep.subr.bf16.mxu0 0
    %289 = vmatpush1.bf16.msra.mxu0 %v271
    %290 = vmatprep.subr.bf16.mxu0 0
    %291 = vmatpush1.bf16.msra.mxu0 %v272
    %292 = vmatprep.subr.bf16.mxu0 0
    %293 = vmatpush1.bf16.msra.mxu0 %v273
    %294 = vmatprep.subr.bf16.mxu0 0
    %295 = vmatpush1.bf16.msra.mxu0 %v274
    %296 = vmatprep.subr.bf16.mxu0 0
    %297 = vmatpush1.bf16.msra.mxu0 %v275
    %298 = vmatprep.subr.bf16.mxu0 0
    %299 = vmatpush1.bf16.msra.mxu0 %v276
    %300 = vmatprep.subr.bf16.mxu0 0
    %301 = vmatpush1.bf16.msra.mxu0 %v277
    %302 = vmatprep.subr.bf16.mxu0 0
    %303 = vmatpush1.bf16.msra.mxu0 0
    %304 = vmatprep.subr.bf16.mxu0 0
    %305 = vmatpush1.bf16.msra.mxu0 0
    %306 = vmatprep.subr.bf16.mxu0 0
    %307 = vmatpush1.bf16.msra.mxu0 0
    %308 = vmatprep.subr.bf16.mxu0 0
    %309 = vmatpush1.bf16.msra.mxu0 0
    %310 = vmatprep.subr.bf16.mxu0 0
    %311 = vmatpush1.bf16.msra.mxu0 0
    %312 = vmatprep.subr.bf16.mxu0 0
    %313 = vmatpush1.bf16.msra.mxu0 0
    %314 = vmatprep.subr.bf16.mxu0 0
    %315 = vmatpush1.bf16.msra.mxu0 0
    %316 = vmatprep.subr.bf16.mxu0 0
    %317 = vmatpush1.bf16.msra.mxu0 0
    %318 = vmatprep.mubr.bf16.mxu0 0
    %319 = vmatmul.mubr.bf16.gmra.mrb[0].mxu0 %v237
    %v320 = vpop.f32.mrb[0].mxu0
    %v321 = vadd.f32 0.0, %v320
    %v322 = vpop.f32.mrb[0].mxu0
    %v323 = vpop.f32.mrb[0].mxu0
    %v324 = vpop.f32.mrb[0].mxu0
    %325 = vdwg.mxu0
    %v326 = vmax.f32 %v321, 0.0
    %v327 = vpack.c.bf16 %v326, %v326
    %v344 = vunpack.c.l.b16 %v72
    %v345 = vunpack.c.l.b16 %v73
    %v346 = vunpack.c.l.b16 %v74
    %v347 = vunpack.c.l.b16 %v75
    %v348 = vunpack.c.l.b16 %v76
    %v349 = vunpack.c.l.b16 %v77
    %v350 = vunpack.c.l.b16 %v78
    %v351 = vunpack.c.l.b16 %v79
    %v352 = vunpack.c.l.b16 %v80
    %v353 = vunpack.c.l.b16 %v81
    %v354 = vunpack.c.l.b16 %v82
    %v355 = vunpack.c.l.b16 %v83
    %v356 = vunpack.c.l.b16 %v84
    %v357 = vunpack.c.l.b16 %v85
    %v358 = vunpack.c.l.b16 %v86
    %v359 = vunpack.c.l.b16 %v87
    %v360 = vpack.c.b16 %v345, %v344
    %v361 = vpack.c.b16 %v347, %v346
    %v362 = vpack.c.b16 %v349, %v348
    %v363 = vpack.c.b16 %v351, %v350
    %v364 = vpack.c.b16 %v353, %v352
    %v365 = vpack.c.b16 %v355, %v354
    %v366 = vpack.c.b16 %v357, %v356
    %v367 = vpack.c.b16 %v359, %v358
    %376 = vmatprep.subr.bf16.mxu0 0
    %377 = vmatpush1.bf16.msra.mxu0 %v360
    %378 = vmatprep.subr.bf16.mxu0 0
    %379 = vmatpush1.bf16.msra.mxu0 %v361
    %380 = vmatprep.subr.bf16.mxu0 0
    %381 = vmatpush1.bf16.msra.mxu0 %v362
    %382 = vmatprep.subr.bf16.mxu0 0
    %383 = vmatpush1.bf16.msra.mxu0 %v363
    %384 = vmatprep.subr.bf16.mxu0 0
    %385 = vmatpush1.bf16.msra.mxu0 %v364
    %386 = vmatprep.subr.bf16.mxu0 0
    %387 = vmatpush1.bf16.msra.mxu0 %v365
    %388 = vmatprep.subr.bf16.mxu0 0
    %389 = vmatpush1.bf16.msra.mxu0 %v366
    %390 = vmatprep.subr.bf16.mxu0 0
    %391 = vmatpush1.bf16.msra.mxu0 %v367
    %392 = vmatprep.subr.bf16.mxu0 0
    %393 = vmatpush1.bf16.msra.mxu0 0
    %394 = vmatprep.subr.bf16.mxu0 0
    %395 = vmatpush1.bf16.msra.mxu0 0
    %396 = vmatprep.subr.bf16.mxu0 0
    %397 = vmatpush1.bf16.msra.mxu0 0
    %398 = vmatprep.subr.bf16.mxu0 0
    %399 = vmatpush1.bf16.msra.mxu0 0
    %400 = vmatprep.subr.bf16.mxu0 0
    %401 = vmatpush1.bf16.msra.mxu0 0
    %402 = vmatprep.subr.bf16.mxu0 0
    %403 = vmatpush1.bf16.msra.mxu0 0
    %404 = vmatprep.subr.bf16.mxu0 0
    %405 = vmatpush1.bf16.msra.mxu0 0
    %406 = vmatprep.subr.bf16.mxu0 0
    %407 = vmatpush1.bf16.msra.mxu0 0
    %408 = vmatprep.mubr.bf16.mxu0 0
    %409 = vmatmul.mubr.bf16.gmra.mrb[0].mxu0 %v327
    %v410 = vpop.f32.mrb[0].mxu0
    %v411 = vadd.f32 0.0, %v410
    %v412 = vpop.f32.mrb[0].mxu0
    %v413 = vpop.f32.mrb[0].mxu0
    %v414 = vpop.f32.mrb[0].mxu0
    %415 = vdwg.mxu0
    %416 = vst [vmem:[%s2] sm:$0xff] %v411
    // Predicated region
    $region18: #{actor_critic_forward.1} parent=1 // pred_check
      _
    $region19: #{actor_critic_forward.1} parent=1 // pred_check_branch
      %418 = sbr.rel (0) target = $region21
    $region20: #{actor_critic_forward.1} parent=1 // pred_region
      _
    $region21: #{actor_critic_forward.1} parent=1 // pred_fallthru
      _
    // Predicated region
    $region22: #{actor_critic_forward.1} parent=1 // pred_check
      _
    $region23: #{actor_critic_forward.1} parent=1 // pred_check_branch
      %420 = sbr.rel (0) target = $region25
    $region24: #{actor_critic_forward.1} parent=1 // pred_region
      _
    $region25: #{actor_critic_forward.1} parent=1 // pred_fallthru
      _
    %421 = vsyncpa [#allocation3], 1
    %422 = vsyncpa [#allocation5], 1

</llo_original>
